<compile_context>
chip_gen: v7x
topology: tpu7x:2x2x1
jax: 0.10.0
libtpu: 0.0.40
codegen_flags: <defaults>
</compile_context>

<pallas_src>
import jax
import jax.numpy as jnp
from jax.experimental import pallas as pl
from jax.experimental.pallas import tpu as pltpu

_LANE = 128
_MAX_TILE_ROWS = 2048     # (2048, 128) f32 tile = 1 MiB/buffer -> ~4 MiB double-buffered
_NUM_PARTIALS = 2         # leading "parallel" grid axis (v7x megacore; free on v5e/v6e)
_SMALL_N = 64 * 1024      # below this, XLA's fused elementwise+reduce wins


def _cdiv(a, b):
    return -(-a // b)


def _round_up(a, b):
    return _cdiv(a, b) * b


def _min_sublanes(dtype):
    # Sublane multiple required for this dtype's packing: 8 for 4B, 16 for 2B, 32 for 1B.
    return {4: 8, 2: 16, 1: 32}.get(jnp.dtype(dtype).itemsize, 8)


def _make_kernel(n, tiles_per_partial, total_tiles, tile_rows):
    tile_elems = tile_rows * _LANE

    def kernel(x_ref, y_ref, o_ref, acc_ref):
        p = pl.program_id(0)
        t = pl.program_id(1)

        @pl.when(t == 0)
        def _():
            acc_ref[...] = jnp.zeros_like(acc_ref)

        linear = p * tiles_per_partial + t
        in_range = linear < total_tiles          # grid slots past the last tile are skipped
        base = linear * tile_elems
        interior = base + tile_elems <= n        # no padding/garbage inside this tile

        x = x_ref[...].astype(jnp.float32)       # (tile_rows, 128)
        y = y_ref[...].astype(jnp.float32)
        z = -(x * y)
        # Stable softplus: log(1 + exp(z)) = max(z, 0) + log1p(exp(-|z|))
        e2 = jnp.maximum(z, 0.0) + jnp.log1p(jnp.exp(-jnp.abs(z)))

        # Hot path: fully-valid interior tile, unmasked sublane-only reduce.
        @pl.when(jnp.logical_and(in_range, interior))
        def _():
            acc_ref[...] += jnp.sum(e2, axis=0, keepdims=True)

        # Tail path: mask padded zeros (softplus(0)=log 2 would bias the mean) and
        # any unspecified data read by the ragged last block.
        @pl.when(jnp.logical_and(in_range, jnp.logical_not(interior)))
        def _():
            row = jax.lax.broadcasted_iota(jnp.int32, (tile_rows, _LANE), 0)
            lane = jax.lax.broadcasted_iota(jnp.int32, (tile_rows, _LANE), 1)
            valid = (base + row * _LANE + lane) < n
            acc_ref[...] += jnp.sum(jnp.where(valid, e2, 0.0), axis=0, keepdims=True)

        @pl.when(t == pl.num_programs(1) - 1)
        def _():
            o_ref[...] = acc_ref[...]

    return kernel


def logistic_loss(x, y, *, min_pallas_elems=_SMALL_N):
    """Pallas TPU equivalent of the PyTorch logistic_loss module.

    x: (N, 1) or (N,) logits, y: (N,) +/-1 labels -> scalar float32 loss.
    Inputs may be f32/bf16/int8; narrower label dtypes cut HBM traffic and are
    upcast inside the kernel.
    """
    xf = jnp.reshape(x, (-1,))
    yf = jnp.reshape(y, (-1,))
    n = xf.shape[0]

    # Small-N fast path: fused XLA elementwise + reduce beats any pallas_call here.
    if n < max(int(min_pallas_elems), 1):
        z = -(xf.astype(jnp.float32) * yf.astype(jnp.float32))
        return jnp.mean(jnp.logaddexp(0.0, z))

    row_align = max(_min_sublanes(xf.dtype), _min_sublanes(yf.dtype))
    rows = _cdiv(n, _LANE)
    rows_padded = _round_up(rows, row_align)
    padded_n = rows_padded * _LANE

    # Lane/sublane-dense repack.  Aligned N -> pure metadata reshape (no HBM copy);
    # otherwise pad only to the next row_align*128 boundary (never to a full tile).
    if padded_n == n:
        x2 = xf.reshape(rows_padded, _LANE)
        y2 = yf.reshape(rows_padded, _LANE)
    else:
        x2 = jnp.pad(xf, (0, padded_n - n)).reshape(rows_padded, _LANE)
        y2 = jnp.pad(yf, (0, padded_n - n)).reshape(rows_padded, _LANE)

    # Partial/tile selection: split 2 ways whenever there are >= 2 minimal tiles
    # (keeps both v7x TensorCores busy), cap tiles at ~1 MiB per input buffer.
    num_partials = _NUM_PARTIALS if rows_padded >= _NUM_PARTIALS * row_align else 1
    tile_rows = min(_round_up(_cdiv(rows_padded, num_partials), row_align),
                    _round_up(_MAX_TILE_ROWS, row_align))
    total_tiles = _cdiv(rows_padded, tile_rows)
    tiles_per_partial = _cdiv(total_tiles, num_partials)

    kernel = _make_kernel(n, tiles_per_partial, total_tiles, tile_rows)

    def in_idx(p, t):
        # Clamp so grid slots past the last real tile re-point at a valid block
        # (kept in-bounds for the DMA); the kernel skips their contribution.
        return (jnp.minimum(p * tiles_per_partial + t, total_tiles - 1), 0)

    partials = pl.pallas_call(
        kernel,
        out_shape=jax.ShapeDtypeStruct((num_partials, _LANE), jnp.float32),
        grid_spec=pltpu.PrefetchScalarGridSpec(
            num_scalar_prefetch=0,
            grid=(num_partials, tiles_per_partial),
            in_specs=[
                pl.BlockSpec((tile_rows, _LANE), in_idx),
                pl.BlockSpec((tile_rows, _LANE), in_idx),
            ],
            out_specs=pl.BlockSpec((1, _LANE), lambda p, t: (p, 0)),
            scratch_shapes=[pltpu.VMEM((1, _LANE), jnp.float32)],
        ),
        compiler_params=pltpu.CompilerParams(
            dimension_semantics=("parallel", "arbitrary"),
        ),
    )(x2, y2)

    # Final cross-lane / cross-partial reduction + mean (tiny, done by XLA).
    return jnp.sum(partials) / jnp.float32(n)


if __name__ == "__main__":
    key = jax.random.PRNGKey(0)
    kx, ky = jax.random.split(key)

    def ref_loss(xx, yy):
        nn = xx.shape[0]
        return jnp.mean(jnp.logaddexp(0.0, -(xx.reshape(nn) * yy)))

    # 1) Small shape consistent with the module (x: (N,1) logits, y: (N,) +/-1 labels),
    #    forced through the Pallas kernel (single ragged tile, tail-mask path).
    N = 8
    x = jax.random.normal(kx, (N, 1), dtype=jnp.float32)
    y = jnp.sign(jax.random.normal(ky, (N,), dtype=jnp.float32))
    y = jnp.where(y == 0, 1.0, y)
    loss = logistic_loss(x, y, min_pallas_elems=0)
    jax.block_until_ready(loss)
    ref = ref_loss(x, y)
    assert jnp.allclose(loss, ref, atol=1e-5, rtol=1e-4), (loss, ref)

    # Default small-N path (fused jnp fast path) must agree too.
    loss_fast = logistic_loss(x, y)
    jax.block_until_ready(loss_fast)
    assert jnp.allclose(loss_fast, ref, atol=1e-5, rtol=1e-4), (loss_fast, ref)

    # 2) Aligned N: zero-copy repack (no pad), grid (2, 1), both partials busy.
    N2 = 307_200  # multiple of 1024 -> metadata reshape only
    k1, k2 = jax.random.split(ky)
    x2 = jax.random.normal(k1, (N2, 1), dtype=jnp.float32)
    y2 = jnp.sign(jax.random.normal(k2, (N2,), dtype=jnp.float32))
    y2 = jnp.where(y2 == 0, 1.0, y2)
    loss2 = logistic_loss(x2, y2)
    jax.block_until_ready(loss2)
    ref2 = ref_loss(x2, y2)
    assert jnp.allclose(loss2, ref2, atol=1e-4, rtol=2e-4), (loss2, ref2)

    # 3) Unaligned N with an odd tile count: small pad, ragged last block,
    #    and a clamped/skipped duplicate grid slot (grid (2, 3), 5 real tiles).
    N3 = 1_200_000
    k3, k4 = jax.random.split(k2)
    x3 = jax.random.normal(k3, (N3, 1), dtype=jnp.float32)
    y3 = jnp.sign(jax.random.normal(k4, (N3,), dtype=jnp.float32))
    y3 = jnp.where(y3 == 0, 1.0, y3)
    loss3 = logistic_loss(x3, y3)
    jax.block_until_ready(loss3)
    ref3 = ref_loss(x3, y3)
    assert jnp.allclose(loss3, ref3, atol=1e-4, rtol=2e-4), (loss3, ref3)

    print("KERNEL_OK")
</pallas_src>

<mosaic_0001>
module attributes {stable_mosaic.version = 11 : i64} {
  func.func @kernel(%arg0: i32, %arg1: i32, %arg2: memref<8x128xf32, #tpu.memory_space<vmem>>, %arg3: memref<8x128xf32, #tpu.memory_space<vmem>>, %arg4: memref<1x128xf32, #tpu.memory_space<vmem>>, %arg5: memref<1x128xf32, #tpu.memory_space<vmem>>) attributes {dimension_semantics = [#tpu.dimension_semantics<parallel>, #tpu.dimension_semantics<arbitrary>], iteration_bounds = array<i64: 1, 1>, scalar_prefetch = 0 : i64, scratch_operands = 1 : i64, tpu.core_type = #tpu.core_type<tc>, window_params = [{transform_indices = @transform_0, window_bounds = array<i64: 8, 128>}, {transform_indices = @transform_1, window_bounds = array<i64: 8, 128>}, {transform_indices = @transform_2, window_bounds = array<i64: 1, 128>}]} {
    %c0_i32 = arith.constant 0 : i32
    %0 = arith.cmpi eq, %arg1, %c0_i32 : i32
    %1 = arith.extui %0 : i1 to i32
    %c0_i32_0 = arith.constant 0 : i32
    %2 = arith.cmpi ne, %1, %c0_i32_0 : i32
    scf.if %2 {
      %cst_12 = arith.constant 0.000000e+00 : f32
      %32 = vector.broadcast %cst_12 : f32 to vector<1x128xf32>
      %c0_13 = arith.constant 0 : index
      %c0_14 = arith.constant 0 : index
      %33 = vector.load %arg5[%c0_13, %c0_14] : memref<1x128xf32, #tpu.memory_space<vmem>>, vector<1x128xf32>
      tpu.vector_store %arg5[%c0_13, %c0_14], %32 {strides = array<i32>} : memref<1x128xf32, #tpu.memory_space<vmem>>, vector<1x128xf32>,
    } else {
    }
    %c1_i32 = arith.constant 1 : i32
    %3 = arith.muli %arg0, %c1_i32 : i32
    %4 = arith.addi %3, %arg1 : i32
    %c1_i32_1 = arith.constant 1 : i32
    %5 = arith.cmpi slt, %4, %c1_i32_1 : i32
    %c1024_i32 = arith.constant 1024 : i32
    %6 = arith.muli %4, %c1024_i32 : i32
    %c1024_i32_2 = arith.constant 1024 : i32
    %7 = arith.addi %6, %c1024_i32_2 : i32
    %c8_i32 = arith.constant 8 : i32
    %8 = arith.cmpi sle, %7, %c8_i32 : i32
    %c0 = arith.constant 0 : index
    %c0_3 = arith.constant 0 : index
    %9 = vector.load %arg2[%c0, %c0_3] : memref<8x128xf32, #tpu.memory_space<vmem>>, vector<8x128xf32>
    %c0_4 = arith.constant 0 : index
    %c0_5 = arith.constant 0 : index
    %10 = vector.load %arg3[%c0_4, %c0_5] : memref<8x128xf32, #tpu.memory_space<vmem>>, vector<8x128xf32>
    %11 = arith.mulf %9, %10 : vector<8x128xf32>
    %cst = arith.constant 0.000000e+00 : f32
    %12 = vector.broadcast %cst : f32 to vector<8x128xf32>
    %13 = arith.subf %12, %11 : vector<8x128xf32>
    %cst_6 = arith.constant 0.000000e+00 : f32
    %14 = vector.broadcast %cst_6 : f32 to vector<8x128xf32>
    %15 = arith.maximumf %13, %14 : vector<8x128xf32>
    %16 = math.absf %13 : vector<8x128xf32>
    %cst_7 = arith.constant 0.000000e+00 : f32
    %17 = vector.broadcast %cst_7 : f32 to vector<8x128xf32>
    %18 = arith.subf %17, %16 : vector<8x128xf32>
    %19 = math.exp %18 : vector<8x128xf32>
    %20 = math.log1p %19 : vector<8x128xf32>
    %21 = arith.addf %15, %20 : vector<8x128xf32>
    %22 = arith.andi %5, %8 : i1
    %23 = arith.extui %22 : i1 to i32
    %c0_i32_8 = arith.constant 0 : i32
    %24 = arith.cmpi ne, %23, %c0_i32_8 : i32
    scf.if %24 {
      %c0_12 = arith.constant 0 : index
      %c0_13 = arith.constant 0 : index
      %32 = vector.load %arg5[%c0_12, %c0_13] : memref<1x128xf32, #tpu.memory_space<vmem>>, vector<1x128xf32>
      %cst_14 = arith.constant dense<0.000000e+00> : vector<128xf32>
      %33 = vector.multi_reduction <add>, %21, %cst_14 [0] : vector<8x128xf32> to vector<128xf32>
      %34 = vector.shape_cast %33 : vector<128xf32> to vector<1x128xf32>
      %35 = arith.addf %32, %34 : vector<1x128xf32>
      %c0_15 = arith.constant 0 : index
      %c0_16 = arith.constant 0 : index
      %36 = vector.load %arg5[%c0_15, %c0_16] : memref<1x128xf32, #tpu.memory_space<vmem>>, vector<1x128xf32>
      tpu.vector_store %arg5[%c0_15, %c0_16], %35 {strides = array<i32>} : memref<1x128xf32, #tpu.memory_space<vmem>>, vector<1x128xf32>,
    } else {
    }
    %true = arith.constant true
    %25 = arith.xori %8, %true : i1
    %26 = arith.andi %5, %25 : i1
    %27 = arith.extui %26 : i1 to i32
    %c0_i32_9 = arith.constant 0 : i32
    %28 = arith.cmpi ne, %27, %c0_i32_9 : i32
    scf.if %28 {
      %32 = tpu.iota {dimensions = array<i32: 0>} : vector<8x128xi32>
      %33 = tpu.iota {dimensions = array<i32: 1>} : vector<8x128xi32>
      %c128_i32 = arith.constant 128 : i32
      %34 = vector.broadcast %c128_i32 : i32 to vector<8x128xi32>
      %35 = arith.muli %32, %34 : vector<8x128xi32>
      %36 = vector.broadcast %6 : i32 to vector<8x128xi32>
      %37 = arith.addi %36, %35 : vector<8x128xi32>
      %38 = arith.addi %37, %33 : vector<8x128xi32>
      %c8_i32_12 = arith.constant 8 : i32
      %39 = vector.broadcast %c8_i32_12 : i32 to vector<8x128xi32>
      %40 = arith.cmpi slt, %38, %39 : vector<8x128xi32>
      %c0_13 = arith.constant 0 : index
      %c0_14 = arith.constant 0 : index
      %41 = vector.load %arg5[%c0_13, %c0_14] : memref<1x128xf32, #tpu.memory_space<vmem>>, vector<1x128xf32>
      %cst_15 = arith.constant 0.000000e+00 : f32
      %42 = vector.broadcast %cst_15 : f32 to vector<8x128xf32>
      %43 = arith.select %40, %21, %42 : vector<8x128xi1>, vector<8x128xf32>
      %cst_16 = arith.constant dense<0.000000e+00> : vector<128xf32>
      %44 = vector.multi_reduction <add>, %43, %cst_16 [0] : vector<8x128xf32> to vector<128xf32>
      %45 = vector.shape_cast %44 : vector<128xf32> to vector<1x128xf32>
      %46 = arith.addf %41, %45 : vector<1x128xf32>
      %c0_17 = arith.constant 0 : index
      %c0_18 = arith.constant 0 : index
      %47 = vector.load %arg5[%c0_17, %c0_18] : memref<1x128xf32, #tpu.memory_space<vmem>>, vector<1x128xf32>
      tpu.vector_store %arg5[%c0_17, %c0_18], %46 {strides = array<i32>} : memref<1x128xf32, #tpu.memory_space<vmem>>, vector<1x128xf32>,
    } else {
    }
    %c0_i32_10 = arith.constant 0 : i32
    %29 = arith.cmpi eq, %arg1, %c0_i32_10 : i32
    %30 = arith.extui %29 : i1 to i32
    %c0_i32_11 = arith.constant 0 : i32
    %31 = arith.cmpi ne, %30, %c0_i32_11 : i32
    scf.if %31 {
      %c0_12 = arith.constant 0 : index
      %c0_13 = arith.constant 0 : index
      %32 = vector.load %arg5[%c0_12, %c0_13] : memref<1x128xf32, #tpu.memory_space<vmem>>, vector<1x128xf32>
      %c0_14 = arith.constant 0 : index
      %c0_15 = arith.constant 0 : index
      %33 = vector.load %arg4[%c0_14, %c0_15] : memref<1x128xf32, #tpu.memory_space<vmem>>, vector<1x128xf32>
      tpu.vector_store %arg4[%c0_14, %c0_15], %32 {strides = array<i32>} : memref<1x128xf32, #tpu.memory_space<vmem>>, vector<1x128xf32>,
    } else {
    }
    return
  }
  func.func @transform_0(%arg0: i32, %arg1: i32) -> (i32, i32) {
    %c1_i32 = arith.constant 1 : i32
    %0 = arith.muli %arg0, %c1_i32 : i32
    %1 = arith.addi %0, %arg1 : i32
    %c0_i32 = arith.constant 0 : i32
    %2 = arith.minsi %1, %c0_i32 : i32
    %c0_i32_0 = arith.constant 0 : i32
    %c0_i32_1 = arith.constant 0 : i32
    return %2, %c0_i32_0 : i32, i32
  }
  func.func @transform_1(%arg0: i32, %arg1: i32) -> (i32, i32) {
    %c1_i32 = arith.constant 1 : i32
    %0 = arith.muli %arg0, %c1_i32 : i32
    %1 = arith.addi %0, %arg1 : i32
    %c0_i32 = arith.constant 0 : i32
    %2 = arith.minsi %1, %c0_i32 : i32
    %c0_i32_0 = arith.constant 0 : i32
    %c0_i32_1 = arith.constant 0 : i32
    return %2, %c0_i32_0 : i32, i32
  }
  func.func @transform_2(%arg0: i32, %arg1: i32) -> (i32, i32) {
    %c0_i32 = arith.constant 0 : i32
    %c0_i32_0 = arith.constant 0 : i32
    return %arg0, %c0_i32 : i32, i32
  }
}

</mosaic_0001>

<llo_original>
// kernel: tpu_custom_call.1
$region0: #{tpu_custom_call.1}
  #allocation0 [shape = 'u32[]', space=smem, size = 0x4, offset = 0x4, fixed_abs, tag = 'smem constant byte address 0x4 - core index']
  #allocation1 [shape = 'u32[144,128]{1,0:T(1,128)}', space=vmem, size = 0x12000, scoped, tag = 'internal scratch']
  #allocation2 [shape = 'f32[1,128]{1,0:T(1,128)}', space=vmem, size = 0x200, scoped, tag = 'scratch operand']
  %s0 = inlined_call_operand.hbm [shape: f32[8,128], index: 0, kind: input, shape index: {}]
  %s1 = inlined_call_operand.hbm [shape: f32[8,128], index: 1, kind: input, shape index: {}]
  %s2 = inlined_call_operand.hbm [shape: f32[1,128], index: 2, kind: output, shape index: {}]
  %s3 = sld [smem:[#allocation0]]
  $region42: #{tpu_custom_call.1} parent=0
    _
  %s5 = ssub.s32 1, %s3
  %s6 = scalar_select 0, %s5, %s3
  $region1: #{tpu_custom_call.1} parent=0
    #allocation3 [shape = 'u8[4096]{0}', space=vmem, size = 0x1000, scoped, tag = 'input window, operand 0, single buffered']
    #allocation4 [shape = 's32[1]{0}', space=sflag, size = 0x4, scoped, tag = 'scoped memory for tpu_custom_call.1']
    #allocation5 [shape = 's32[1]{0}', space=sflag, size = 0x4, scoped, tag = 'scoped memory for tpu_custom_call.1']
    #allocation6 [shape = 'u8[4096]{0}', space=vmem, size = 0x1000, scoped, tag = 'input window, operand 1, single buffered']
    #allocation7 [shape = 's32[1]{0}', space=sflag, size = 0x4, scoped, tag = 'scoped memory for tpu_custom_call.1']
    #allocation8 [shape = 'u8[512]{0}', space=vmem, size = 0x400, scoped, tag = 'output window, operand 0, single buffered']
    %7 = vsyncpa [#allocation4], 0
    %8 = vsyncpa [#allocation7], 0
    %9 = vsyncpa [#allocation5], 0
    // Predicated region
    $region2: #{tpu_custom_call.1} parent=1 // pred_check
      _
    $region3: #{tpu_custom_call.1} parent=1 // pred_check_branch
      %11 = sbr.rel (0) target = $region5
    $region4: #{tpu_custom_call.1} parent=1 // pred_region
      %s12 = sadd.s32 0, 0
      %p13 = scmp.lt.s32.totalorder %s12, 0
      %s14 = scalar_select %p13, %s12, 0
      %s16 = ssub.s32 128, 128
      %17 = vsyncadd [#allocation4], %s16
      %s18 = smul.addr %s14, 128
      %s19 = scalar_lea.hbm %s0, %s18
      %s21 = sshll.u32 [#allocation3], 4
      %s22 = int_to_ptr.vmem [resolvable:$true] %s21
      %24 = dma.hbm_to_vmem [thread:$0]  %s19, 128, %s22, [#allocation4]
    $region5: #{tpu_custom_call.1} parent=1 // pred_fallthru
      _
    // Predicated region
    $region6: #{tpu_custom_call.1} parent=1 // pred_check
      _
    $region7: #{tpu_custom_call.1} parent=1 // pred_check_branch
      %26 = sbr.rel (0) target = $region9
    $region8: #{tpu_custom_call.1} parent=1 // pred_region
      %s27 = sadd.s32 0, 0
      %p28 = scmp.lt.s32.totalorder %s27, 0
      %s29 = scalar_select %p28, %s27, 0
      %s31 = ssub.s32 128, 128
      %32 = vsyncadd [#allocation7], %s31
      %s33 = smul.addr %s29, 128
      %s34 = scalar_lea.hbm %s1, %s33
      %s36 = sshll.u32 [#allocation6], 4
      %s37 = int_to_ptr.vmem [resolvable:$true] %s36
      %39 = dma.hbm_to_vmem [thread:$0]  %s34, 128, %s37, [#allocation7]
    $region9: #{tpu_custom_call.1} parent=1 // pred_fallthru
      _
    // Predicated region
    $region10: #{tpu_custom_call.1} parent=1 // pred_check
      _
    $region11: #{tpu_custom_call.1} parent=1 // pred_check_branch
      %41 = sbr.rel (0) target = $region13
    $region12: #{tpu_custom_call.1} parent=1 // pred_region
      %42 = dma.done [#allocation4], 128
    $region13: #{tpu_custom_call.1} parent=1 // pred_fallthru
      _
    // Predicated region
    $region14: #{tpu_custom_call.1} parent=1 // pred_check
      _
    $region15: #{tpu_custom_call.1} parent=1 // pred_check_branch
      %44 = sbr.rel (0) target = $region17
    $region16: #{tpu_custom_call.1} parent=1 // pred_region
      %45 = dma.done [#allocation7], 128
    $region17: #{tpu_custom_call.1} parent=1 // pred_fallthru
      _
    %s46 = sadd.s32 0, 0
    %p47 = scmp.lt.s32.totalorder %s46, 0
    %s48 = scalar_select %p47, %s46, 0
    %s49 = sadd.s32 0, 0
    %p50 = scmp.lt.s32.totalorder %s49, 0
    %s51 = scalar_select %p50, %s49, 0
    %p52 = scmp.eq.s32.totalorder 0, 0
    // Predicated region
    $region18: #{tpu_custom_call.1} parent=1 // pred_check
      %p53 = pneg %p52
    $region19: #{tpu_custom_call.1} parent=1 // pred_check_branch
      %55 = sbr.rel (%p53) target = $region21
    $region20: #{tpu_custom_call.1} parent=1 // pred_region
      %56 = vst [vmem:[#allocation2] sm:$0x1] 0.0
    $region21: #{tpu_custom_call.1} parent=1 // pred_fallthru
      _
    %s57 = sadd.s32 0, 0
    %p58 = scmp.lt.s32.totalorder %s57, 1
    %s59 = smul.u32 %s57, 1024
    %s60 = sadd.s32 %s59, 1024
    %p61 = scmp.le.s32.totalorder %s60, 8
    %v62 = vld [vmem:[#allocation3] sm:$0xff]
    %v63 = vld [vmem:[#allocation6] sm:$0xff]
    %v64 = vmul.f32 %v62, %v63
    %v65 = vsub.f32 0.0, %v64
    %v66 = vmax.f32 %v65, 0.0
    %v67 = vand.u32 2147483647, %v65
    %v68 = vsub.f32 0.0, %v67
    %v69 = vmul.f32 %v68, 1.442695
    %v70 = vpow.pop %v69
    %v71 = vadd.f32 %v70, 1.0
    %v72 = vlog2.pop %v71
    %v73 = vmul.f32 %v72, 0.6931472
    %v74 = vmul.f32 -0.5, %v70
    %v75 = vadd.f32 %v74, 1.0
    %v76 = vmul.f32 %v75, %v70
    %v77 = vand.u32 2147483647, %v70
    %vm78 = vcmp.lt.f32.partialorder %v77, 0.0004427343
    %v79 = vsel %vm78, %v76, %v73
    %v80 = vadd.f32 %v66, %v79
    %p81 = pnand %p58, %p61
    %p82 = pneg %p81
    // Predicated region
    $region22: #{tpu_custom_call.1} parent=1 // pred_check
      _
    $region23: #{tpu_custom_call.1} parent=1 // pred_check_branch
      %84 = sbr.rel (%p81) target = $region25
    $region24: #{tpu_custom_call.1} parent=1 // pred_region
      %v85 = vld [vmem:[#allocation2] sm:$0x1]
      %v86 = vrot.slane %v80, 4
      %v87 = vadd.f32 %v80, %v86
      %v88 = vrot.slane %v87, 2
      %v89 = vadd.f32 %v87, %v88
      %v90 = vrot.slane %v89, 1
      %v91 = vadd.f32 %v89, %v90
      %v92 = vadd.f32 %v85, %v91
      %93 = vst [vmem:[#allocation2] sm:$0x1] %v92
    $region25: #{tpu_custom_call.1} parent=1 // pred_fallthru
      _
    %p94 = scmp.gt.s32.totalorder %s60, 8
    %p95 = pnand %p58, %p94
    %p96 = pneg %p95
    // Predicated region
    $region26: #{tpu_custom_call.1} parent=1 // pred_check
      _
    $region27: #{tpu_custom_call.1} parent=1 // pred_check_branch
      %98 = sbr.rel (%p95) target = $region29
    $region28: #{tpu_custom_call.1} parent=1 // pred_region
      %v99 = vlaneseq
      %v100 = vshrl.u32 %v99, 7
      %v101 = vlaneseq
      %v102 = vand.u32 %v101, 127
      %v103 = vmul.u32 %v100, 128
      %v104 = vstv %s59
      %v105 = vadd.s32 %v104, %v103
      %v106 = vadd.s32 %v105, %v102
      %vm107 = vcmp.lt.s32.totalorder %v106, 8
      %v108 = vld [vmem:[#allocation2] sm:$0x1]
      %v109 = vsel %vm107, %v80, 0.0
      %v110 = vrot.slane %v109, 4
      %v111 = vadd.f32 %v109, %v110
      %v112 = vrot.slane %v111, 2
      %v113 = vadd.f32 %v111, %v112
      %v114 = vrot.slane %v113, 1
      %v115 = vadd.f32 %v113, %v114
      %v116 = vadd.f32 %v108, %v115
      %117 = vst [vmem:[#allocation2] sm:$0x1] %v116
    $region29: #{tpu_custom_call.1} parent=1 // pred_fallthru
      _
    // Predicated region
    $region30: #{tpu_custom_call.1} parent=1 // pred_check
      %p118 = pneg %p52
    $region31: #{tpu_custom_call.1} parent=1 // pred_check_branch
      %120 = sbr.rel (%p118) target = $region33
    $region32: #{tpu_custom_call.1} parent=1 // pred_region
      %v121 = vld [vmem:[#allocation2] sm:$0x1]
      %122 = vst [vmem:[#allocation8] sm:$0x1] %v121
    $region33: #{tpu_custom_call.1} parent=1 // pred_fallthru
      _
    // Predicated region
    $region34: #{tpu_custom_call.1} parent=1 // pred_check
      _
    $region35: #{tpu_custom_call.1} parent=1 // pred_check_branch
      %124 = sbr.rel (0) target = $region37
    $region36: #{tpu_custom_call.1} parent=1 // pred_region
      %s126 = ssub.s32 16, 16
      %127 = vsyncadd [#allocation5], %s126
      %s129 = sshll.u32 [#allocation8], 4
      %s130 = int_to_ptr.vmem [resolvable:$true] %s129
      %132 = dma.vmem_to_hbm [thread:$0]  %s130, 16, %s2, [#allocation5]
    $region37: #{tpu_custom_call.1} parent=1 // pred_fallthru
      _
    // Predicated region
    $region38: #{tpu_custom_call.1} parent=1 // pred_check
      _
    $region39: #{tpu_custom_call.1} parent=1 // pred_check_branch
      %134 = sbr.rel (0) target = $region41
    $region40: #{tpu_custom_call.1} parent=1 // pred_region
      %135 = dma.done [#allocation5], 16
    $region41: #{tpu_custom_call.1} parent=1 // pred_fallthru
      _
    %136 = vsyncpa [#allocation4], 1
    %137 = vsyncpa [#allocation7], 1
    %138 = vsyncpa [#allocation5], 1

</llo_original>
